<compile_context>
chip_gen: v6e
topology: v6e:2x2x1
jax: 0.10.0
libtpu: 0.0.40
codegen_flags: <defaults>
</compile_context>

<pallas_src>
import jax
import jax.numpy as jnp
from jax.experimental import pallas as pl
from jax.experimental.pallas import tpu as pltpu

_SMOOTH = 0.1
_TARGET_BLOCK_BYTES = 1 << 20  # ~1 MiB per input buffer per grid step


def _dice_kernel(p_ref, t_ref, out_ref):
    """Accumulates lane-wide partial sums for one (batch, W-tile).

    p_ref / t_ref : (H_blk, W_blk) tiles of channel 0, native dtype.
    out_ref       : (3, W_blk) f32 accumulator, resident across the H grid axis.
                    row 0: sum_h p*t, row 1: sum_h p, row 2: sum_h t.
    """

    @pl.when(pl.program_id(2) == 0)
    def _():
        out_ref[...] = jnp.zeros_like(out_ref)

    p = p_ref[...].astype(jnp.float32)
    t = t_ref[...].astype(jnp.float32)

    out_ref[0:1, :] += jnp.sum(p * t, axis=0, keepdims=True)  # intersection
    out_ref[1:2, :] += jnp.sum(p, axis=0, keepdims=True)      # sum(pred)
    out_ref[2:3, :] += jnp.sum(t, axis=0, keepdims=True)      # sum(true)


def _pick_blocks(H, W, itemsize):
    """(h_blk, w_blk): layout-legal tiles with block bytes <= ~1 MiB."""
    # Lane (W) tile: only split when W is a multiple of 128 AND a single
    # 8-row full-W stripe would already exceed the budget.
    if W % 128 == 0 and 8 * W * itemsize > _TARGET_BLOCK_BYTES:
        w_blk = max(128, (_TARGET_BLOCK_BYTES // (8 * itemsize)) // 128 * 128)
        while W % w_blk != 0:
            w_blk -= 128
    else:
        w_blk = W

    # Sublane (H) tile: largest multiple-of-8 divisor of H within budget.
    if H % 8 != 0:
        h_blk = H  # full-extent H block: always layout-legal, no masking
    else:
        target_rows = max(
            8, (_TARGET_BLOCK_BYTES // max(1, w_blk * itemsize)) // 8 * 8
        )
        h_blk = min(H, target_rows)
        while H % h_blk != 0:
            h_blk -= 8
    return h_blk, w_blk


@jax.jit
def dice_loss(y_pred, y_true):
    assert y_pred.shape == y_true.shape, (
        f"Sizes of prediction ({y_pred.shape}) and GT ({y_true.shape}) not equal"
    )
    B, C, H, W = y_pred.shape
    itemsize = max(y_pred.dtype.itemsize, y_true.dtype.itemsize)
    h_blk, w_blk = _pick_blocks(H, W, itemsize)
    grid = (B, W // w_blk, H // h_blk)

    # Channel 0 is selected here (block index 0 on the squeezed channel dim),
    # so the other channels are never read from HBM.
    in_spec = pl.BlockSpec(
        (None, None, h_blk, w_blk), lambda b, w, h: (b, 0, h, w)
    )
    out_spec = pl.BlockSpec((None, 3, w_blk), lambda b, w, h: (b, 0, w))

    partials = pl.pallas_call(
        _dice_kernel,
        out_shape=jax.ShapeDtypeStruct((B, 3, W), jnp.float32),
        grid=grid,
        in_specs=[in_spec, in_spec],
        out_specs=out_spec,
        compiler_params=pltpu.CompilerParams(
            dimension_semantics=("parallel", "parallel", "arbitrary"),
        ),
    )(y_pred, y_true)

    # Tiny epilogue in plain XLA: (B, 3, W) -> 3 scalars -> dice loss.
    sums = jnp.sum(partials, axis=(0, 2))
    inter, sp, st = sums[0], sums[1], sums[2]
    dsc = (2.0 * inter + _SMOOTH) / (sp + st + _SMOOTH)
    return 1.0 - dsc


def _reference(y_pred, y_true, smooth=_SMOOTH):
    p = y_pred[:, 0].reshape(-1).astype(jnp.float32)
    t = y_true[:, 0].reshape(-1).astype(jnp.float32)
    inter = jnp.sum(p * t)
    dsc = (2.0 * inter + smooth) / (jnp.sum(p) + jnp.sum(t) + smooth)
    return 1.0 - dsc


def _check(y_pred, y_true, tol=2e-5):
    loss = dice_loss(y_pred, y_true)
    jax.block_until_ready(loss)
    ref = _reference(y_pred, y_true)
    assert jnp.allclose(loss, ref, atol=tol, rtol=tol), (loss, ref)


if __name__ == "__main__":
    key = jax.random.PRNGKey(0)
    k1, k2, k3, k4 = jax.random.split(key, 4)

    # Main check: [B, C, H, W] = [2, 4, 16, 16], float32.
    y_pred = jax.nn.sigmoid(jax.random.normal(k1, (2, 4, 16, 16), jnp.float32))
    y_true = (jax.random.uniform(k2, (2, 4, 16, 16)) > 0.5).astype(jnp.float32)
    _check(y_pred, y_true)

    # Ragged H (H % 8 != 0) -> full-extent H block path.
    yp2 = jax.nn.sigmoid(jax.random.normal(k3, (2, 2, 10, 16), jnp.float32))
    yt2 = (jax.random.uniform(k4, (2, 2, 10, 16)) > 0.5).astype(jnp.float32)
    _check(yp2, yt2)

    # Native bf16 inputs stream through HBM at half the bytes; kernel upcasts.
    _check(y_pred.astype(jnp.bfloat16), y_true.astype(jnp.bfloat16), tol=1e-4)

    print("KERNEL_OK")
</pallas_src>

<mosaic_0001>
module attributes {stable_mosaic.version = 11 : i64} {
  func.func @_dice_kernel(%arg0: i32, %arg1: i32, %arg2: i32, %arg3: memref<1x1x16x16xf32, #tpu.memory_space<vmem>>, %arg4: memref<1x1x16x16xf32, #tpu.memory_space<vmem>>, %arg5: memref<1x3x16xf32, #tpu.memory_space<vmem>>) attributes {dimension_semantics = [#tpu.dimension_semantics<parallel>, #tpu.dimension_semantics<parallel>, #tpu.dimension_semantics<arbitrary>], iteration_bounds = array<i64: 2, 1, 1>, scalar_prefetch = 0 : i64, scratch_operands = 0 : i64, tpu.core_type = #tpu.core_type<tc>, window_params = [{transform_indices = @transform_0, window_bounds = array<i64: 1, 1, 16, 16>}, {transform_indices = @transform_1, window_bounds = array<i64: 1, 1, 16, 16>}, {transform_indices = @transform_2, window_bounds = array<i64: 1, 3, 16>}]} {
    %c0_i32 = arith.constant 0 : i32
    %0 = arith.cmpi eq, %arg2, %c0_i32 : i32
    %1 = arith.extui %0 : i1 to i32
    %c0_i32_0 = arith.constant 0 : i32
    %2 = arith.cmpi ne, %1, %c0_i32_0 : i32
    scf.if %2 {
      %cst_26 = arith.constant 0.000000e+00 : f32
      %32 = vector.broadcast %cst_26 : f32 to vector<3x16xf32>
      %c0_27 = arith.constant 0 : index
      %c0_28 = arith.constant 0 : index
      %c0_29 = arith.constant 0 : index
      %33 = vector.load %arg5[%c0_27, %c0_28, %c0_29] : memref<1x3x16xf32, #tpu.memory_space<vmem>>, vector<1x3x16xf32>
      %34 = vector.shape_cast %33 : vector<1x3x16xf32> to vector<3x16xf32>
      %35 = vector.shape_cast %32 : vector<3x16xf32> to vector<1x3x16xf32>
      tpu.vector_store %arg5[%c0_27, %c0_28, %c0_29], %35 {strides = array<i32>} : memref<1x3x16xf32, #tpu.memory_space<vmem>>, vector<1x3x16xf32>,
    } else {
    }
    %c0 = arith.constant 0 : index
    %c0_1 = arith.constant 0 : index
    %c0_2 = arith.constant 0 : index
    %c0_3 = arith.constant 0 : index
    %3 = vector.load %arg3[%c0, %c0_1, %c0_2, %c0_3] : memref<1x1x16x16xf32, #tpu.memory_space<vmem>>, vector<1x1x16x16xf32>
    %4 = vector.shape_cast %3 : vector<1x1x16x16xf32> to vector<16x16xf32>
    %c0_4 = arith.constant 0 : index
    %c0_5 = arith.constant 0 : index
    %c0_6 = arith.constant 0 : index
    %c0_7 = arith.constant 0 : index
    %5 = vector.load %arg4[%c0_4, %c0_5, %c0_6, %c0_7] : memref<1x1x16x16xf32, #tpu.memory_space<vmem>>, vector<1x1x16x16xf32>
    %6 = vector.shape_cast %5 : vector<1x1x16x16xf32> to vector<16x16xf32>
    %c0_8 = arith.constant 0 : index
    %c0_9 = arith.constant 0 : index
    %c0_10 = arith.constant 0 : index
    %7 = vector.load %arg5[%c0_8, %c0_9, %c0_10] : memref<1x3x16xf32, #tpu.memory_space<vmem>>, vector<1x1x16xf32>
    %8 = vector.shape_cast %7 : vector<1x1x16xf32> to vector<1x16xf32>
    %9 = arith.mulf %4, %6 : vector<16x16xf32>
    %cst = arith.constant dense<0.000000e+00> : vector<16xf32>
    %10 = vector.multi_reduction <add>, %9, %cst [0] : vector<16x16xf32> to vector<16xf32>
    %11 = vector.shape_cast %10 : vector<16xf32> to vector<1x16xf32>
    %12 = arith.addf %8, %11 : vector<1x16xf32>
    %c0_11 = arith.constant 0 : index
    %c0_12 = arith.constant 0 : index
    %c0_13 = arith.constant 0 : index
    %13 = vector.load %arg5[%c0_11, %c0_12, %c0_13] : memref<1x3x16xf32, #tpu.memory_space<vmem>>, vector<1x1x16xf32>
    %14 = vector.shape_cast %13 : vector<1x1x16xf32> to vector<1x16xf32>
    %15 = vector.shape_cast %12 : vector<1x16xf32> to vector<1x1x16xf32>
    tpu.vector_store %arg5[%c0_11, %c0_12, %c0_13], %15 {strides = array<i32>} : memref<1x3x16xf32, #tpu.memory_space<vmem>>, vector<1x1x16xf32>,
    %c0_14 = arith.constant 0 : index
    %c1 = arith.constant 1 : index
    %c0_15 = arith.constant 0 : index
    %16 = vector.load %arg5[%c0_14, %c1, %c0_15] : memref<1x3x16xf32, #tpu.memory_space<vmem>>, vector<1x1x16xf32>
    %17 = vector.shape_cast %16 : vector<1x1x16xf32> to vector<1x16xf32>
    %cst_16 = arith.constant dense<0.000000e+00> : vector<16xf32>
    %18 = vector.multi_reduction <add>, %4, %cst_16 [0] : vector<16x16xf32> to vector<16xf32>
    %19 = vector.shape_cast %18 : vector<16xf32> to vector<1x16xf32>
    %20 = arith.addf %17, %19 : vector<1x16xf32>
    %c0_17 = arith.constant 0 : index
    %c1_18 = arith.constant 1 : index
    %c0_19 = arith.constant 0 : index
    %21 = vector.load %arg5[%c0_17, %c1_18, %c0_19] : memref<1x3x16xf32, #tpu.memory_space<vmem>>, vector<1x1x16xf32>
    %22 = vector.shape_cast %21 : vector<1x1x16xf32> to vector<1x16xf32>
    %23 = vector.shape_cast %20 : vector<1x16xf32> to vector<1x1x16xf32>
    tpu.vector_store %arg5[%c0_17, %c1_18, %c0_19], %23 {strides = array<i32>} : memref<1x3x16xf32, #tpu.memory_space<vmem>>, vector<1x1x16xf32>,
    %c0_20 = arith.constant 0 : index
    %c2 = arith.constant 2 : index
    %c0_21 = arith.constant 0 : index
    %24 = vector.load %arg5[%c0_20, %c2, %c0_21] : memref<1x3x16xf32, #tpu.memory_space<vmem>>, vector<1x1x16xf32>
    %25 = vector.shape_cast %24 : vector<1x1x16xf32> to vector<1x16xf32>
    %cst_22 = arith.constant dense<0.000000e+00> : vector<16xf32>
    %26 = vector.multi_reduction <add>, %6, %cst_22 [0] : vector<16x16xf32> to vector<16xf32>
    %27 = vector.shape_cast %26 : vector<16xf32> to vector<1x16xf32>
    %28 = arith.addf %25, %27 : vector<1x16xf32>
    %c0_23 = arith.constant 0 : index
    %c2_24 = arith.constant 2 : index
    %c0_25 = arith.constant 0 : index
    %29 = vector.load %arg5[%c0_23, %c2_24, %c0_25] : memref<1x3x16xf32, #tpu.memory_space<vmem>>, vector<1x1x16xf32>
    %30 = vector.shape_cast %29 : vector<1x1x16xf32> to vector<1x16xf32>
    %31 = vector.shape_cast %28 : vector<1x16xf32> to vector<1x1x16xf32>
    tpu.vector_store %arg5[%c0_23, %c2_24, %c0_25], %31 {strides = array<i32>} : memref<1x3x16xf32, #tpu.memory_space<vmem>>, vector<1x1x16xf32>,
    return
  }
  func.func @transform_0(%arg0: i32, %arg1: i32, %arg2: i32) -> (i32, i32, i32, i32) {
    %c0_i32 = arith.constant 0 : i32
    %c0_i32_0 = arith.constant 0 : i32
    return %arg0, %c0_i32, %arg2, %arg1 : i32, i32, i32, i32
  }
  func.func @transform_1(%arg0: i32, %arg1: i32, %arg2: i32) -> (i32, i32, i32, i32) {
    %c0_i32 = arith.constant 0 : i32
    %c0_i32_0 = arith.constant 0 : i32
    return %arg0, %c0_i32, %arg2, %arg1 : i32, i32, i32, i32
  }
  func.func @transform_2(%arg0: i32, %arg1: i32, %arg2: i32) -> (i32, i32, i32) {
    %c0_i32 = arith.constant 0 : i32
    %c0_i32_0 = arith.constant 0 : i32
    return %arg0, %c0_i32, %arg1 : i32, i32, i32
  }
}

</mosaic_0001>

<llo_original>
// kernel: dice_loss.1
$region0: #{dice_loss.1}
  #allocation0 [shape = 'u32[]', space=smem, size = 0x4, offset = 0x4, fixed_abs, tag = 'smem constant byte address 0x4 - core index']
  #allocation1 [shape = 'u32[144,128]{1,0:T(1,128)}', space=vmem, size = 0x12000, scoped, tag = 'internal scratch']
  %s0 = inlined_call_operand.hbm [shape: f32[2,4,16,16], index: 0, kind: input, shape index: {}]
  %s1 = inlined_call_operand.hbm [shape: f32[2,4,16,16], index: 1, kind: input, shape index: {}]
  %s2 = inlined_call_operand.vmem [shape: f32[2,3,16], index: 2, kind: output, shape index: {}]
  %s3 = sld [smem:[#allocation0]]
  $region53: #{dice_loss.1} parent=0
    _
  %s5 = ssub.s32 1, %s3
  %s6 = scalar_select 0, %s5, %s3
  $region1: #{dice_loss.1} parent=0
    #allocation2 [shape = 'u8[16384]{0}', space=vmem, size = 0x4000, scoped, tag = 'input window, operand 0']
    #allocation3 [shape = 's32[2]{0}', space=sflag, size = 0x8, scoped, tag = 'scoped memory for dice_loss.1']
    #allocation4 [shape = 'u8[16384]{0}', space=vmem, size = 0x4000, scoped, tag = 'input window, operand 1']
    #allocation5 [shape = 's32[2]{0}', space=sflag, size = 0x8, scoped, tag = 'scoped memory for dice_loss.1']
    %7 = vsyncpa [#allocation3], 0
    %s8 = scalar_lea.sflag [#allocation3], 1
    %9 = vsyncpa %s8, 0
    %10 = vsyncpa [#allocation5], 0
    %s11 = scalar_lea.sflag [#allocation5], 1
    %12 = vsyncpa %s11, 0
    loop: start=0, step=1, limit=4
    $region2: #{dice_loss.1} parent=1 // loop_pre_header
      _
    $region3: #{dice_loss.1} parent=1 // loop_header
      %s14 = sphi 0, %s18
      %p15 = scmp.ge.s32.totalorder %s14, 4
      %s21 = sphi 0, %s40
      %s22 = sphi 0, %s36
      %s23 = sphi 0, %s32
      %s24 = sphi 0, %s21
      %s25 = sphi 0, %s22
      %s26 = sphi 0, %s23
      %s27 = sphi 0, %s24
      %s28 = sphi 0, %s25
      %s29 = sphi 0, %s26
      %s47 = sphi 0, %s49
      %s50 = sphi 0, %s47
      %s51 = sphi 0, %s50
      %s67 = sphi 0, %s51
      %s77 = sphi 0, %s79
      %s80 = sphi 0, %s77
      %s81 = sphi 0, %s80
      %s97 = sphi 0, %s81
      %s105 = sphi 0, %s107
      %s108 = sphi 0, %s105
      %s109 = sphi 0, %s108
      %s125 = sphi 0, %s109
    $region4: #{dice_loss.1} parent=1 // loop_header_branch
      %17 = sbr.rel (%p15) target = $region8
    $region5: #{dice_loss.1} parent=1 // loop_body
      %s19 = ssub.s32 %s14, 1
      %s20 = ssub.s32 %s14, 2
      %s30 = sadd.s32 1, %s23
      %p31 = scmp.ge.s32.totalorder %s30, 1
      %s32 = scalar_select %p31, 0, %s30
      %s33 = sadd.s32 1, %s22
      %s34 = scalar_select %p31, %s33, %s22
      %p35 = scmp.ge.s32.totalorder %s34, 1
      %s36 = scalar_select %p35, 0, %s34
      %s37 = sadd.s32 1, %s21
      %s38 = scalar_select %p35, %s37, %s21
      %p39 = scmp.ge.s32.totalorder %s38, 2
      %s40 = scalar_select %p39, 0, %s38
      %s41 = ssub.s32 %s21, %s40
      %s42 = ssub.s32 %s23, %s32
      %s43 = sor.u32 %s41, %s42
      %s44 = ssub.s32 %s22, %s36
      %s45 = sor.u32 %s43, %s44
      %p46 = scmp.eq.s32.totalorder %s45, 0
      %s48 = sadd.s32 %s47, 1
      %s49 = scalar_select %p46, %s47, %s48
      %p52 = pneg %p46
      %p53 = scmp.eq.s32.totalorder %s14, 1
      %p54 = por %p52, %p53
      %p55 = scmp.ne.s32.totalorder %s47, %s50
      %p56 = scmp.eq.s32.totalorder %s14, 0
      %p57 = por %p55, %p56
      %p58 = scmp.ne.s32.totalorder %s47, %s50
      %p59 = scmp.eq.s32.totalorder %s19, 1
      %p60 = por %p58, %p59
      %p61 = scmp.ne.s32.totalorder %s50, %s51
      %p62 = scmp.eq.s32.totalorder %s19, 0
      %p63 = por %p61, %p62
      %p64 = scmp.ne.s32.totalorder %s50, %s51
      %p65 = scmp.eq.s32.totalorder %s20, 1
      %p66 = por %p64, %p65
      %p68 = scmp.ne.s32.totalorder %s51, %s67
      %p69 = scmp.eq.s32.totalorder %s20, 0
      %p70 = por %p68, %p69
      %s71 = ssub.s32 %s21, %s40
      %s72 = ssub.s32 %s23, %s32
      %s73 = sor.u32 %s71, %s72
      %s74 = ssub.s32 %s22, %s36
      %s75 = sor.u32 %s73, %s74
      %p76 = scmp.eq.s32.totalorder %s75, 0
      %s78 = sadd.s32 %s77, 1
      %s79 = scalar_select %p76, %s77, %s78
      %p82 = pneg %p76
      %p83 = scmp.eq.s32.totalorder %s14, 1
      %p84 = por %p82, %p83
      %p85 = scmp.ne.s32.totalorder %s77, %s80
      %p86 = scmp.eq.s32.totalorder %s14, 0
      %p87 = por %p85, %p86
      %p88 = scmp.ne.s32.totalorder %s77, %s80
      %p89 = scmp.eq.s32.totalorder %s19, 1
      %p90 = por %p88, %p89
      %p91 = scmp.ne.s32.totalorder %s80, %s81
      %p92 = scmp.eq.s32.totalorder %s19, 0
      %p93 = por %p91, %p92
      %p94 = scmp.ne.s32.totalorder %s80, %s81
      %p95 = scmp.eq.s32.totalorder %s20, 1
      %p96 = por %p94, %p95
      %p98 = scmp.ne.s32.totalorder %s81, %s97
      %p99 = scmp.eq.s32.totalorder %s20, 0
      %p100 = por %p98, %p99
      %s101 = ssub.s32 %s21, %s40
      %s102 = ssub.s32 %s22, %s36
      %s103 = sor.u32 %s101, %s102
      %p104 = scmp.eq.s32.totalorder %s103, 0
      %s106 = sadd.s32 %s105, 1
      %s107 = scalar_select %p104, %s105, %s106
      %p110 = pneg %p104
      %p111 = scmp.eq.s32.totalorder %s14, 1
      %p112 = por %p110, %p111
      %p113 = scmp.ne.s32.totalorder %s105, %s108
      %p114 = scmp.eq.s32.totalorder %s14, 0
      %p115 = por %p113, %p114
      %p116 = scmp.ne.s32.totalorder %s105, %s108
      %p117 = scmp.eq.s32.totalorder %s19, 1
      %p118 = por %p116, %p117
      %p119 = scmp.ne.s32.totalorder %s108, %s109
      %p120 = scmp.eq.s32.totalorder %s19, 0
      %p121 = por %p119, %p120
      %p122 = scmp.ne.s32.totalorder %s108, %s109
      %p123 = scmp.eq.s32.totalorder %s20, 1
      %p124 = por %p122, %p123
      %p126 = scmp.ne.s32.totalorder %s109, %s125
      %p127 = scmp.eq.s32.totalorder %s20, 0
      %p128 = por %p126, %p127
      %p129 = scmp.le.s32.totalorder 1, %s14
      %p130 = scmp.lt.s32.totalorder %s14, 3
      %p131 = pnand %p129, %p130
      %p132 = pneg %p131
      // Predicated region
      $region9: #{dice_loss.1} parent=5 // pred_check
        _
      $region10: #{dice_loss.1} parent=5 // pred_check_branch
        %134 = sbr.rel (%p131) target = $region12
      $region11: #{dice_loss.1} parent=5 // pred_region
        %s135 = ssub.s32 %s14, 1
      $region12: #{dice_loss.1} parent=5 // pred_fallthru
        _
      %p136 = scmp.lt.s32.totalorder %s14, 2
      // Predicated region
      $region13: #{dice_loss.1} parent=5 // pred_check
        %p137 = pneg %p136
      $region14: #{dice_loss.1} parent=5 // pred_check_branch
        %139 = sbr.rel (%p137) target = $region16
      $region15: #{dice_loss.1} parent=5 // pred_region
        // Predicated region
        $region17: #{dice_loss.1} parent=15 // pred_check
          %p140 = pneg %p57
        $region18: #{dice_loss.1} parent=15 // pred_check_branch
          %142 = sbr.rel (%p140) target = $region20
        $region19: #{dice_loss.1} parent=15 // pred_region
          %s143 = sand.u32 %s47, 1
          %s144 = scalar_lea.sflag [#allocation3], %s143
          %s145 = sand.u32 %s47, 1
          %s146 = smul.addr %s145, 16
          %s147 = scalar_lea.vmem [#allocation2], %s146
          %s148 = smul.u32 2, %s23
          %s150 = ssub.s32 256, 256
          %151 = vsyncadd %s144, %s150
          %s152 = sadd.s32 %s22, %s148
          %s153 = smul.addr %s21, 8
          %s154 = sadd.s32 %s152, %s153
          %s155 = smul.addr %s154, 128
          %s156 = scalar_lea.hbm %s0, %s155
          %s157 = sshll.u32 %s147, 4
          %s158 = int_to_ptr.vmem [resolvable:$true] %s157
          %163 = dma.hbm_to_vmem [thread:$0]  %s156, 256, %s158, %s144, 128, 128, 8
        $region20: #{dice_loss.1} parent=15 // pred_fallthru
          _
        // Predicated region
        $region21: #{dice_loss.1} parent=15 // pred_check
          %p164 = pneg %p87
        $region22: #{dice_loss.1} parent=15 // pred_check_branch
          %166 = sbr.rel (%p164) target = $region24
        $region23: #{dice_loss.1} parent=15 // pred_region
          %s167 = sand.u32 %s77, 1
          %s168 = scalar_lea.sflag [#allocation5], %s167
          %s169 = sand.u32 %s77, 1
          %s170 = smul.addr %s169, 16
          %s171 = scalar_lea.vmem [#allocation4], %s170
          %s172 = smul.u32 2, %s23
          %s174 = ssub.s32 256, 256
          %175 = vsyncadd %s168, %s174
          %s176 = sadd.s32 %s22, %s172
          %s177 = smul.addr %s21, 8
          %s178 = sadd.s32 %s176, %s177
          %s179 = smul.addr %s178, 128
          %s180 = scalar_lea.hbm %s1, %s179
          %s181 = sshll.u32 %s171, 4
          %s182 = int_to_ptr.vmem [resolvable:$true] %s181
          %187 = dma.hbm_to_vmem [thread:$0]  %s180, 256, %s182, %s168, 128, 128, 8
        $region24: #{dice_loss.1} parent=15 // pred_fallthru
          _
      $region16: #{dice_loss.1} parent=5 // pred_fallthru
        _
      %p188 = scmp.le.s32.totalorder 1, %s14
      %p189 = scmp.lt.s32.totalorder %s14, 3
      %p190 = pnand %p188, %p189
      %p191 = pneg %p190
      // Predicated region
      $region25: #{dice_loss.1} parent=5 // pred_check
        _
      $region26: #{dice_loss.1} parent=5 // pred_check_branch
        %193 = sbr.rel (%p190) target = $region28
      $region27: #{dice_loss.1} parent=5 // pred_region
        %s194 = ssub.s32 %s14, 1
        %s195 = sand.u32 %s50, 1
        %s196 = scalar_lea.sflag [#allocation3], %s195
        %s197 = sand.u32 %s50, 1
        %s198 = smul.addr %s197, 16
        %s199 = scalar_lea.vmem [#allocation2], %s198
        // Predicated region
        $region29: #{dice_loss.1} parent=27 // pred_check
          %p200 = pneg %p63
        $region30: #{dice_loss.1} parent=27 // pred_check_branch
          %202 = sbr.rel (%p200) target = $region32
        $region31: #{dice_loss.1} parent=27 // pred_region
          %203 = dma.done %s196, 256
        $region32: #{dice_loss.1} parent=27 // pred_fallthru
          _
        %s204 = sand.u32 %s80, 1
        %s205 = scalar_lea.sflag [#allocation5], %s204
        %s206 = sand.u32 %s80, 1
        %s207 = smul.addr %s206, 16
        %s208 = scalar_lea.vmem [#allocation4], %s207
        // Predicated region
        $region33: #{dice_loss.1} parent=27 // pred_check
          %p209 = pneg %p93
        $region34: #{dice_loss.1} parent=27 // pred_check_branch
          %211 = sbr.rel (%p209) target = $region36
        $region35: #{dice_loss.1} parent=27 // pred_region
          %212 = dma.done %s205, 256
        $region36: #{dice_loss.1} parent=27 // pred_fallthru
          _
        %s213 = sand.u32 %s50, 1
        %s214 = scalar_lea.sflag [#allocation3], %s213
        %s215 = sand.u32 %s50, 1
        %s216 = smul.addr %s215, 16
        %s217 = scalar_lea.vmem [#allocation2], %s216
        %p218 = pneg %p63
        %p219 = pneg %p60
        %s220 = sand.u32 %s80, 1
        %s221 = scalar_lea.sflag [#allocation5], %s220
        %s222 = sand.u32 %s80, 1
        %s223 = smul.addr %s222, 16
        %s224 = scalar_lea.vmem [#allocation4], %s223
        %p225 = pneg %p93
        %p226 = pneg %p90
        %p227 = pneg %p121
        %p228 = pneg %p118
        %p229 = scmp.lt.s32.totalorder %s24, 1
        %s230 = scalar_select %p229, %s24, 1
        %p231 = scmp.lt.s32.totalorder %s25, 0
        %s232 = scalar_select %p231, %s25, 0
        %s233 = sadd.s32 %s232, %s230
        %s234 = smul.addr %s233, 4
        %s235 = scalar_lea.vmem %s2, %s234
        %s236 = smul.u32 2, %s26
        %s237 = smul.u32 2, %s26
        %p238 = scmp.lt.s32.totalorder %s24, 1
        %s239 = scalar_select %p238, %s24, 1
        %p240 = scmp.lt.s32.totalorder %s25, 0
        %s241 = scalar_select %p240, %s25, 0
        %s242 = sadd.s32 %s241, %s239
        %s243 = smul.addr %s242, 4
        %s244 = scalar_lea.vmem %s2, %s243
        %p245 = scmp.eq.s32.totalorder %s26, 0
        // Predicated region
        $region37: #{dice_loss.1} parent=27 // pred_check
          %p246 = pneg %p245
        $region38: #{dice_loss.1} parent=27 // pred_check_branch
          %248 = sbr.rel (%p246) target = $region40
        $region39: #{dice_loss.1} parent=27 // pred_region
          %vm249 = vcmask 124928
          %250 = vst.msk [vmem:[%s244] sm:$0x7] %vm249, 0.0
        $region40: #{dice_loss.1} parent=27 // pred_fallthru
          _
        %v251 = vld [vmem:[%s199] sm:$0xff]
        %v252 = vld [vmem:[%s199 + $0x8] sm:$0xff]
        %v253 = vld [vmem:[%s208] sm:$0xff]
        %v254 = vld [vmem:[%s208 + $0x8] sm:$0xff]
        %v255 = vld [vmem:[%s244] sm:$0x1]
        %v256 = vmul.f32 %v251, %v253
        %v257 = vmul.f32 %v252, %v254
        %vm258 = vcmask 130048
        %v259 = vsel %vm258, %v256, 0.0
        %v260 = vsel %vm258, %v257, 0.0
        %v261 = vadd.f32 %v259, %v260
        %v262 = vrot.slane %v261, 4
        %v263 = vadd.f32 %v261, %v262
        %v264 = vrot.slane %v263, 2
        %v265 = vadd.f32 %v263, %v264
        %v266 = vrot.slane %v265, 1
        %v267 = vadd.f32 %v265, %v266
        %v268 = vadd.f32 %v255, %v267
        %vm269 = vcmask 122880
        %270 = vst.msk [vmem:[%s244] sm:$0x1] %vm269, %v268
        %v271 = vld [vmem:[%s244 + $0x1] sm:$0x1]
        %v272 = vsel %vm258, %v251, 0.0
        %v273 = vsel %vm258, %v252, 0.0
        %v274 = vadd.f32 %v272, %v273
        %v275 = vrot.slane %v274, 4
        %v276 = vadd.f32 %v274, %v275
        %v277 = vrot.slane %v276, 2
        %v278 = vadd.f32 %v276, %v277
        %v279 = vrot.slane %v278, 1
        %v280 = vadd.f32 %v278, %v279
        %v281 = vadd.f32 %v271, %v280
        %282 = vst.msk [vmem:[%s244 + $0x1] sm:$0x1] %vm269, %v281
        %v283 = vld [vmem:[%s244 + $0x2] sm:$0x1]
        %v284 = vsel %vm258, %v253, 0.0
        %v285 = vsel %vm258, %v254, 0.0
        %v286 = vadd.f32 %v284, %v285
        %v287 = vrot.slane %v286, 4
        %v288 = vadd.f32 %v286, %v287
        %v289 = vrot.slane %v288, 2
        %v290 = vadd.f32 %v288, %v289
        %v291 = vrot.slane %v290, 1
        %v292 = vadd.f32 %v290, %v291
        %v293 = vadd.f32 %v283, %v292
        %294 = vst.msk [vmem:[%s244 + $0x2] sm:$0x1] %vm269, %v293
        %p295 = scmp.lt.s32.totalorder %s24, 1
        %s296 = scalar_select %p295, %s24, 1
        %p297 = scmp.lt.s32.totalorder %s25, 0
        %s298 = scalar_select %p297, %s25, 0
        %s299 = sadd.s32 %s298, %s296
        %s300 = smul.addr %s299, 4
        %s301 = scalar_lea.vmem %s2, %s300
        // Predicated region
        $region41: #{dice_loss.1} parent=27 // pred_check
          %p302 = pneg %p118
        $region42: #{dice_loss.1} parent=27 // pred_check_branch
          %304 = sbr.rel (%p302) target = $region44
        $region43: #{dice_loss.1} parent=27 // pred_region
          _
        $region44: #{dice_loss.1} parent=27 // pred_fallthru
          _
      $region28: #{dice_loss.1} parent=5 // pred_fallthru
        _
      %p305 = scmp.le.s32.totalorder 2, %s14
      // Predicated region
      $region45: #{dice_loss.1} parent=5 // pred_check
        %p306 = pneg %p305
      $region46: #{dice_loss.1} parent=5 // pred_check_branch
        %308 = sbr.rel (%p306) target = $region48
      $region47: #{dice_loss.1} parent=5 // pred_region
        %s309 = ssub.s32 %s14, 2
        // Predicated region
        $region49: #{dice_loss.1} parent=47 // pred_check
          %p310 = pneg %p124
        $region50: #{dice_loss.1} parent=47 // pred_check_branch
          %312 = sbr.rel (%p310) target = $region52
        $region51: #{dice_loss.1} parent=47 // pred_region
          %p313 = scmp.lt.s32.totalorder %s27, 1
          %s314 = scalar_select %p313, %s27, 1
          %p315 = scmp.lt.s32.totalorder %s28, 0
          %s316 = scalar_select %p315, %s28, 0
          %s317 = sadd.s32 %s316, %s314
          %s318 = smul.addr %s317, 4
          %s319 = scalar_lea.vmem %s2, %s318
        $region52: #{dice_loss.1} parent=47 // pred_fallthru
          _
      $region48: #{dice_loss.1} parent=5 // pred_fallthru
        _
    $region6: #{dice_loss.1} parent=1 // loop_footer
      %s18 = sadd.s32 1, %s14
    $region7: #{dice_loss.1} parent=1 // loop_footer_branch
      %13 = sbr.rel target = $region3
    $region8: #{dice_loss.1} parent=1 // loop_exit
      _
    %320 = vsyncpa [#allocation3], 1
    %s321 = scalar_lea.sflag [#allocation3], 1
    %322 = vsyncpa %s321, 1
    %323 = vsyncpa [#allocation5], 1
    %s324 = scalar_lea.sflag [#allocation5], 1
    %325 = vsyncpa %s324, 1

</llo_original>
